<compile_context>
chip_gen: v7x
topology: tpu7x:2x2x1
jax: 0.10.0
libtpu: 0.0.40
codegen_flags: <defaults>
</compile_context>

<pallas_src>
import functools
import math

import jax
import jax.numpy as jnp
import numpy as np
from jax.experimental import pallas as pl
from jax.experimental.pallas import tpu as pltpu

_SUBLANE = 8  # f32 sublane granule


# ----------------------------------------------------------------------------
# Kernel
# ----------------------------------------------------------------------------
def _lifting_conv_kernel(x_ref, w_ref, b_ref, m_ref, o_ref, stacked_ref,
                         *, width, ksize, cp, hw, bb):
    # x_ref:       (Bb, Cp, H*W)        batch-block, channels padded to 8,
    #                                   spatial flattened onto lanes (row-major)
    # w_ref:       (4*O, K*K*Cp)        rotated filters, tap-major / chan-minor
    # b_ref:       (4*O, 1)             bias
    # m_ref:       (K*K*Cp, H*W)        per-tap {0,1} edge masks, pre-broadcast
    #                                   over the channel (sublane) axis
    # o_ref:       (Bb, 4*O, H*W)
    # stacked_ref: (K*K*Cp, Bb*H*W)     VMEM scratch holding the shifted images
    r = ksize // 2

    # Fill the stacked scratch one rolled + masked tap at a time (keeps the
    # live vreg set to ~one tap; no taps list, no concat copy).
    for lb in range(bb):                      # tiny static loop over batch slabs
        xf = x_ref[lb]                        # (Cp, H*W)
        t = 0
        for ky in range(ksize):
            for kx in range(ksize):
                dy, dx = ky - r, kx - r
                off = dy * width + dx         # flat lane offset of this tap
                if off == 0:
                    tap = xf                  # center tap: no shift, no mask
                else:
                    shifted = pltpu.roll(xf, shift=(-off) % hw, axis=1)
                    # mask rows [t*Cp, (t+1)*Cp) are identical copies of the
                    # tap-t validity mask -> plain (Cp, H*W) vld, no broadcast.
                    tap = shifted * m_ref[t * cp:(t + 1) * cp, :]
                stacked_ref[t * cp:(t + 1) * cp, lb * hw:(lb + 1) * hw] = tap
                t += 1

    # One MXU matmul does the whole (tap, channel) contraction for the whole
    # fused batch block.
    acc = jnp.dot(w_ref[...], stacked_ref[...],
                  preferred_element_type=jnp.float32)
    acc = acc + b_ref[...]

    for lb in range(bb):
        o_ref[lb] = acc[:, lb * hw:(lb + 1) * hw].astype(o_ref.dtype)


# ----------------------------------------------------------------------------
# Parameter prep (hoisted out of the per-call hot path)
# ----------------------------------------------------------------------------
def build_lifting_params(weight_flat, use_bias, out_channels, in_channels,
                         kernel_size, dtype=jnp.float32):
    """Replicates LiftingConv2d.build_filter once, at parameter-setup time.

    Returns the prebuilt (4*O, K*K*Cp) filter matrix (tap-major / channel-minor,
    channels zero-padded to the 8-sublane granule) and the (4*O, 1) bias.
    Note: the module's build_filter returns literal ones for the bias.
    """
    O, C, K = out_channels, in_channels, kernel_size
    w0 = jnp.asarray(weight_flat, dtype).reshape(O, C, K, K)
    filt = jnp.stack([jnp.rot90(w0, rot, axes=(-2, -1)) for rot in range(4)],
                     axis=1)                                   # (O, 4, C, K, K)
    filt = filt.reshape(O * 4, C, K, K)
    bias = jnp.ones((O * 4,), dtype) if use_bias else jnp.zeros((O * 4,), dtype)

    cp = ((C + _SUBLANE - 1) // _SUBLANE) * _SUBLANE
    if cp != C:
        filt = jnp.pad(filt, ((0, 0), (0, cp - C), (0, 0), (0, 0)))
    # (O4, Cp, K, K) -> (O4, K, K, Cp) -> (O4, K*K*Cp): matches the tap-major /
    # channel-minor order in which the kernel stacks the shifted images.
    w_mat = jnp.transpose(filt, (0, 2, 3, 1)).reshape(O * 4, K * K * cp)
    b_mat = bias.reshape(O * 4, 1)
    return {"w_mat": w_mat, "b_mat": b_mat, "out_channels": O,
            "in_channels": C, "kernel_size": K, "cp": cp}


@functools.lru_cache(maxsize=None)
def _edge_masks_np(height, width, ksize, cp):
    """(K*K*Cp, H*W) {0,1} validity masks, pre-broadcast over channels."""
    r = ksize // 2
    yy, xx = np.meshgrid(np.arange(height), np.arange(width), indexing="ij")
    rows = []
    for ky in range(ksize):
        for kx in range(ksize):
            dy, dx = ky - r, kx - r
            valid = ((yy + dy >= 0) & (yy + dy < height) &
                     (xx + dx >= 0) & (xx + dx < width))
            rows.append(valid.reshape(height * width))
    masks = np.stack(rows).astype(np.float32)                 # (K*K, H*W)
    return np.repeat(masks, cp, axis=0)                       # (K*K*Cp, H*W)


def _num_batch_blocks(batch):
    """1 grid step on single-TC chips (v5e/v6e); 2-way parallel grid on 2-TC chips."""
    kind = ""
    try:
        kind = jax.devices()[0].device_kind.lower()
    except Exception:
        pass
    single_tc = any(s in kind for s in ("lite", "v5e", "v6e"))
    if single_tc:
        return 1
    if batch % 2 == 0:
        return 2
    return 1


# ----------------------------------------------------------------------------
# Forward
# ----------------------------------------------------------------------------
@functools.partial(jax.jit,
                   static_argnames=("ksize", "out_channels", "padding",
                                    "batch_blocks"))
def _lifting_forward_jit(x, w_mat, b_mat, masks, *, ksize, out_channels,
                         padding, batch_blocks):
    B, C, H, W = x.shape
    K = ksize
    HW = H * W
    KK = K * K
    O4 = w_mat.shape[0]
    Cp = w_mat.shape[1] // KK
    Bb = B // batch_blocks
    assert Bb * batch_blocks == B

    # Free (row-major) reshape + tiny channel pad for 8-sublane alignment.
    x_flat = x.reshape(B, C, HW)
    if Cp != C:
        x_flat = jnp.pad(x_flat, ((0, 0), (0, Cp - C), (0, 0)))

    kernel = functools.partial(_lifting_conv_kernel, width=W, ksize=K,
                               cp=Cp, hw=HW, bb=Bb)
    out_flat = pl.pallas_call(
        kernel,
        out_shape=jax.ShapeDtypeStruct((B, O4, HW), x.dtype),
        grid_spec=pltpu.PrefetchScalarGridSpec(
            num_scalar_prefetch=0,
            grid=(batch_blocks,),
            in_specs=[
                pl.BlockSpec((Bb, Cp, HW), lambda g: (g, 0, 0)),
                pl.BlockSpec((O4, KK * Cp), lambda g: (0, 0)),
                pl.BlockSpec((O4, 1), lambda g: (0, 0)),
                pl.BlockSpec((KK * Cp, HW), lambda g: (0, 0)),
            ],
            out_specs=pl.BlockSpec((Bb, O4, HW), lambda g: (g, 0, 0)),
            scratch_shapes=[pltpu.VMEM((KK * Cp, Bb * HW), jnp.float32)],
        ),
        compiler_params=pltpu.CompilerParams(
            dimension_semantics=("parallel",)),
    )(x_flat, w_mat, b_mat, masks)

    out = out_flat.reshape(B, O4, H, W)
    crop = K // 2 - padding                    # 'same' conv -> requested padding
    if crop:
        out = out[:, :, crop:H - crop, crop:W - crop]
    Ho, Wo = out.shape[-2], out.shape[-1]
    return out.reshape(B, out_channels, 4, Ho, Wo)


def lifting_conv2d_forward(x, params, padding=0):
    """Forward pass of LiftingConv2d: (B, C_in, H, W) -> (B, O, 4, H_out, W_out)."""
    B, C, H, W = x.shape
    K = params["kernel_size"]
    assert C == params["in_channels"]
    assert K % 2 == 1, "only odd kernel_size supported"
    assert 0 <= padding <= K // 2  # TODO(synk): padding > kernel_size//2 not implemented

    masks = jnp.asarray(_edge_masks_np(H, W, K, params["cp"]), x.dtype)
    batch_blocks = _num_batch_blocks(B)
    return _lifting_forward_jit(
        x, params["w_mat"].astype(x.dtype), params["b_mat"].astype(x.dtype),
        masks, ksize=K, out_channels=params["out_channels"], padding=padding,
        batch_blocks=batch_blocks)


# ----------------------------------------------------------------------------
# Pure-JAX reference (replicates the PyTorch module)
# ----------------------------------------------------------------------------
def _reference_forward(x, weight_flat, use_bias, out_channels, in_channels,
                       kernel_size, padding=0):
    O, C, K = out_channels, in_channels, kernel_size
    w0 = weight_flat.reshape(O, C, K, K)
    filt = jnp.stack([jnp.rot90(w0, rot, axes=(-2, -1)) for rot in range(4)],
                     axis=1).reshape(O * 4, C, K, K)
    out = jax.lax.conv_general_dilated(
        x, filt, window_strides=(1, 1),
        padding=((padding, padding), (padding, padding)),
        dimension_numbers=("NCHW", "OIHW", "NCHW"))
    if use_bias:
        bias = jnp.ones((O * 4,), x.dtype)
        out = out + bias[None, :, None, None]
    B = x.shape[0]
    return out.reshape(B, O, 4, out.shape[-2], out.shape[-1])


if __name__ == "__main__":
    B, C_in, C_out, H, W, K, PAD = 2, 4, 8, 16, 16, 3, 1

    key = jax.random.PRNGKey(0)
    k_x, k_w = jax.random.split(key)
    x = jax.random.normal(k_x, (B, C_in, H, W), jnp.float32)

    # Matches the module __init__: weight ~ randn(O*I*K^2) / sqrt(O*I).
    weight = jax.random.normal(k_w, (C_out * C_in * K * K,), jnp.float32) / math.sqrt(
        C_out * C_in)

    # One-time parameter prep (hoisted out of the per-call hot path).
    params = build_lifting_params(weight, True, C_out, C_in, K)

    out = lifting_conv2d_forward(x, params, padding=PAD)
    out = jax.block_until_ready(out)
    assert out.shape == (B, C_out, 4, H, W)

    ref = _reference_forward(x, weight, True, C_out, C_in, K, PAD)
    if not np.allclose(np.asarray(out), np.asarray(ref), atol=1e-4, rtol=1e-4):
        raise AssertionError("Pallas LiftingConv2d output mismatches reference")

    print("KERNEL_OK")
</pallas_src>

<mosaic_0001>
module attributes {stable_mosaic.version = 11 : i64} {
  func.func @_lifting_conv_kernel(%arg0: i32, %arg1: memref<1x8x256xf32, #tpu.memory_space<vmem>>, %arg2: memref<32x72xf32, #tpu.memory_space<vmem>>, %arg3: memref<32x1xf32, #tpu.memory_space<vmem>>, %arg4: memref<72x256xf32, #tpu.memory_space<vmem>>, %arg5: memref<1x32x256xf32, #tpu.memory_space<vmem>>, %arg6: memref<72x256xf32, #tpu.memory_space<vmem>>) attributes {dimension_semantics = [#tpu.dimension_semantics<parallel>], iteration_bounds = array<i64: 2>, scalar_prefetch = 0 : i64, scratch_operands = 1 : i64, tpu.core_type = #tpu.core_type<tc>, window_params = [{transform_indices = @transform_0, window_bounds = array<i64: 1, 8, 256>}, {pipeline_mode = #tpu.pipeline_mode<synchronous>, transform_indices = @transform_1, window_bounds = array<i64: 32, 72>}, {pipeline_mode = #tpu.pipeline_mode<synchronous>, transform_indices = @transform_2, window_bounds = array<i64: 32, 1>}, {pipeline_mode = #tpu.pipeline_mode<synchronous>, transform_indices = @transform_3, window_bounds = array<i64: 72, 256>}, {transform_indices = @transform_4, window_bounds = array<i64: 1, 32, 256>}]} {
    %c0 = arith.constant 0 : index
    %c0_0 = arith.constant 0 : index
    %c0_1 = arith.constant 0 : index
    %0 = vector.load %arg1[%c0, %c0_0, %c0_1] : memref<1x8x256xf32, #tpu.memory_space<vmem>>, vector<1x8x256xf32>
    %1 = vector.shape_cast %0 : vector<1x8x256xf32> to vector<8x256xf32>
    %c17_i32 = arith.constant 17 : i32
    %2 = tpu.dynamic_rotate %1 by %c17_i32 dim 1 : vector<8x256xf32>, i32 -> vector<8x256xf32>
    %c0_2 = arith.constant 0 : index
    %c0_3 = arith.constant 0 : index
    %3 = vector.load %arg4[%c0_2, %c0_3] : memref<72x256xf32, #tpu.memory_space<vmem>>, vector<8x256xf32>
    %4 = arith.mulf %2, %3 : vector<8x256xf32>
    %c0_4 = arith.constant 0 : index
    %c0_5 = arith.constant 0 : index
    %5 = vector.load %arg6[%c0_4, %c0_5] : memref<72x256xf32, #tpu.memory_space<vmem>>, vector<8x256xf32>
    tpu.vector_store %arg6[%c0_4, %c0_5], %4 {strides = array<i32>} : memref<72x256xf32, #tpu.memory_space<vmem>>, vector<8x256xf32>,
    %c16_i32 = arith.constant 16 : i32
    %6 = tpu.dynamic_rotate %1 by %c16_i32 dim 1 : vector<8x256xf32>, i32 -> vector<8x256xf32>
    %c8 = arith.constant 8 : index
    %c0_6 = arith.constant 0 : index
    %7 = vector.load %arg4[%c8, %c0_6] : memref<72x256xf32, #tpu.memory_space<vmem>>, vector<8x256xf32>
    %8 = arith.mulf %6, %7 : vector<8x256xf32>
    %c8_7 = arith.constant 8 : index
    %c0_8 = arith.constant 0 : index
    %9 = vector.load %arg6[%c8_7, %c0_8] : memref<72x256xf32, #tpu.memory_space<vmem>>, vector<8x256xf32>
    tpu.vector_store %arg6[%c8_7, %c0_8], %8 {strides = array<i32>} : memref<72x256xf32, #tpu.memory_space<vmem>>, vector<8x256xf32>,
    %c15_i32 = arith.constant 15 : i32
    %10 = tpu.dynamic_rotate %1 by %c15_i32 dim 1 : vector<8x256xf32>, i32 -> vector<8x256xf32>
    %c16 = arith.constant 16 : index
    %c0_9 = arith.constant 0 : index
    %11 = vector.load %arg4[%c16, %c0_9] : memref<72x256xf32, #tpu.memory_space<vmem>>, vector<8x256xf32>
    %12 = arith.mulf %10, %11 : vector<8x256xf32>
    %c16_10 = arith.constant 16 : index
    %c0_11 = arith.constant 0 : index
    %13 = vector.load %arg6[%c16_10, %c0_11] : memref<72x256xf32, #tpu.memory_space<vmem>>, vector<8x256xf32>
    tpu.vector_store %arg6[%c16_10, %c0_11], %12 {strides = array<i32>} : memref<72x256xf32, #tpu.memory_space<vmem>>, vector<8x256xf32>,
    %c1_i32 = arith.constant 1 : i32
    %14 = tpu.dynamic_rotate %1 by %c1_i32 dim 1 : vector<8x256xf32>, i32 -> vector<8x256xf32>
    %c24 = arith.constant 24 : index
    %c0_12 = arith.constant 0 : index
    %15 = vector.load %arg4[%c24, %c0_12] : memref<72x256xf32, #tpu.memory_space<vmem>>, vector<8x256xf32>
    %16 = arith.mulf %14, %15 : vector<8x256xf32>
    %c24_13 = arith.constant 24 : index
    %c0_14 = arith.constant 0 : index
    %17 = vector.load %arg6[%c24_13, %c0_14] : memref<72x256xf32, #tpu.memory_space<vmem>>, vector<8x256xf32>
    tpu.vector_store %arg6[%c24_13, %c0_14], %16 {strides = array<i32>} : memref<72x256xf32, #tpu.memory_space<vmem>>, vector<8x256xf32>,
    %c32 = arith.constant 32 : index
    %c0_15 = arith.constant 0 : index
    %18 = vector.load %arg6[%c32, %c0_15] : memref<72x256xf32, #tpu.memory_space<vmem>>, vector<8x256xf32>
    tpu.vector_store %arg6[%c32, %c0_15], %1 {strides = array<i32>} : memref<72x256xf32, #tpu.memory_space<vmem>>, vector<8x256xf32>,
    %c255_i32 = arith.constant 255 : i32
    %19 = tpu.dynamic_rotate %1 by %c255_i32 dim 1 : vector<8x256xf32>, i32 -> vector<8x256xf32>
    %c40 = arith.constant 40 : index
    %c0_16 = arith.constant 0 : index
    %20 = vector.load %arg4[%c40, %c0_16] : memref<72x256xf32, #tpu.memory_space<vmem>>, vector<8x256xf32>
    %21 = arith.mulf %19, %20 : vector<8x256xf32>
    %c40_17 = arith.constant 40 : index
    %c0_18 = arith.constant 0 : index
    %22 = vector.load %arg6[%c40_17, %c0_18] : memref<72x256xf32, #tpu.memory_space<vmem>>, vector<8x256xf32>
    tpu.vector_store %arg6[%c40_17, %c0_18], %21 {strides = array<i32>} : memref<72x256xf32, #tpu.memory_space<vmem>>, vector<8x256xf32>,
    %c241_i32 = arith.constant 241 : i32
    %23 = tpu.dynamic_rotate %1 by %c241_i32 dim 1 : vector<8x256xf32>, i32 -> vector<8x256xf32>
    %c48 = arith.constant 48 : index
    %c0_19 = arith.constant 0 : index
    %24 = vector.load %arg4[%c48, %c0_19] : memref<72x256xf32, #tpu.memory_space<vmem>>, vector<8x256xf32>
    %25 = arith.mulf %23, %24 : vector<8x256xf32>
    %c48_20 = arith.constant 48 : index
    %c0_21 = arith.constant 0 : index
    %26 = vector.load %arg6[%c48_20, %c0_21] : memref<72x256xf32, #tpu.memory_space<vmem>>, vector<8x256xf32>
    tpu.vector_store %arg6[%c48_20, %c0_21], %25 {strides = array<i32>} : memref<72x256xf32, #tpu.memory_space<vmem>>, vector<8x256xf32>,
    %c240_i32 = arith.constant 240 : i32
    %27 = tpu.dynamic_rotate %1 by %c240_i32 dim 1 : vector<8x256xf32>, i32 -> vector<8x256xf32>
    %c56 = arith.constant 56 : index
    %c0_22 = arith.constant 0 : index
    %28 = vector.load %arg4[%c56, %c0_22] : memref<72x256xf32, #tpu.memory_space<vmem>>, vector<8x256xf32>
    %29 = arith.mulf %27, %28 : vector<8x256xf32>
    %c56_23 = arith.constant 56 : index
    %c0_24 = arith.constant 0 : index
    %30 = vector.load %arg6[%c56_23, %c0_24] : memref<72x256xf32, #tpu.memory_space<vmem>>, vector<8x256xf32>
    tpu.vector_store %arg6[%c56_23, %c0_24], %29 {strides = array<i32>} : memref<72x256xf32, #tpu.memory_space<vmem>>, vector<8x256xf32>,
    %c239_i32 = arith.constant 239 : i32
    %31 = tpu.dynamic_rotate %1 by %c239_i32 dim 1 : vector<8x256xf32>, i32 -> vector<8x256xf32>
    %c64 = arith.constant 64 : index
    %c0_25 = arith.constant 0 : index
    %32 = vector.load %arg4[%c64, %c0_25] : memref<72x256xf32, #tpu.memory_space<vmem>>, vector<8x256xf32>
    %33 = arith.mulf %31, %32 : vector<8x256xf32>
    %c64_26 = arith.constant 64 : index
    %c0_27 = arith.constant 0 : index
    %34 = vector.load %arg6[%c64_26, %c0_27] : memref<72x256xf32, #tpu.memory_space<vmem>>, vector<8x256xf32>
    tpu.vector_store %arg6[%c64_26, %c0_27], %33 {strides = array<i32>} : memref<72x256xf32, #tpu.memory_space<vmem>>, vector<8x256xf32>,
    %c0_28 = arith.constant 0 : index
    %c0_29 = arith.constant 0 : index
    %35 = vector.load %arg2[%c0_28, %c0_29] : memref<32x72xf32, #tpu.memory_space<vmem>>, vector<32x72xf32>
    %c0_30 = arith.constant 0 : index
    %c0_31 = arith.constant 0 : index
    %36 = vector.load %arg6[%c0_30, %c0_31] : memref<72x256xf32, #tpu.memory_space<vmem>>, vector<72x256xf32>
    %cst = arith.constant dense<0.000000e+00> : vector<32x256xf32>
    %37 = tpu.matmul %35, %36, %cst {dimension_numbers = #tpu.dot_dimension_numbers<[1], [0], [0], [1], [0, 0, 1, 1], [], []>} : vector<32x72xf32>, vector<72x256xf32>, vector<32x256xf32> -> vector<32x256xf32>
    %c0_32 = arith.constant 0 : index
    %c0_33 = arith.constant 0 : index
    %38 = vector.load %arg3[%c0_32, %c0_33] : memref<32x1xf32, #tpu.memory_space<vmem>>, vector<32x1xf32>
    %39 = vector.broadcast %38 : vector<32x1xf32> to vector<32x256xf32>
    %40 = arith.addf %37, %39 : vector<32x256xf32>
    %c0_34 = arith.constant 0 : index
    %c0_35 = arith.constant 0 : index
    %c0_36 = arith.constant 0 : index
    %41 = vector.load %arg5[%c0_34, %c0_35, %c0_36] : memref<1x32x256xf32, #tpu.memory_space<vmem>>, vector<1x32x256xf32>
    %42 = vector.shape_cast %41 : vector<1x32x256xf32> to vector<32x256xf32>
    %43 = vector.shape_cast %40 : vector<32x256xf32> to vector<1x32x256xf32>
    tpu.vector_store %arg5[%c0_34, %c0_35, %c0_36], %43 {strides = array<i32>} : memref<1x32x256xf32, #tpu.memory_space<vmem>>, vector<1x32x256xf32>,
    return
  }
  func.func @transform_0(%arg0: i32) -> (i32, i32, i32) {
    %c0_i32 = arith.constant 0 : i32
    %c0_i32_0 = arith.constant 0 : i32
    %c0_i32_1 = arith.constant 0 : i32
    return %arg0, %c0_i32, %c0_i32_0 : i32, i32, i32
  }
  func.func @transform_1(%arg0: i32) -> (i32, i32) {
    %c0_i32 = arith.constant 0 : i32
    %c0_i32_0 = arith.constant 0 : i32
    %c0_i32_1 = arith.constant 0 : i32
    return %c0_i32, %c0_i32_0 : i32, i32
  }
  func.func @transform_2(%arg0: i32) -> (i32, i32) {
    %c0_i32 = arith.constant 0 : i32
    %c0_i32_0 = arith.constant 0 : i32
    %c0_i32_1 = arith.constant 0 : i32
    return %c0_i32, %c0_i32_0 : i32, i32
  }
  func.func @transform_3(%arg0: i32) -> (i32, i32) {
    %c0_i32 = arith.constant 0 : i32
    %c0_i32_0 = arith.constant 0 : i32
    %c0_i32_1 = arith.constant 0 : i32
    return %c0_i32, %c0_i32_0 : i32, i32
  }
  func.func @transform_4(%arg0: i32) -> (i32, i32, i32) {
    %c0_i32 = arith.constant 0 : i32
    %c0_i32_0 = arith.constant 0 : i32
    %c0_i32_1 = arith.constant 0 : i32
    return %arg0, %c0_i32, %c0_i32_0 : i32, i32, i32
  }
}

</mosaic_0001>

<llo_original>
// kernel: _lifting_forward_jit.1
$region0: #{_lifting_forward_jit.1}
  #allocation0 [shape = 'u32[]', space=smem, size = 0x4, offset = 0x4, fixed_abs, tag = 'smem constant byte address 0x4 - core index']
  #allocation1 [shape = 'u32[144,128]{1,0:T(1,128)}', space=vmem, size = 0x12000, scoped, tag = 'internal scratch']
  #allocation2 [shape = 'f32[72,256]{1,0:T(8,128)}', space=vmem, size = 0x12000, scoped, tag = 'scratch operand']
  %s0 = inlined_call_operand.vmem [shape: f32[2,8,256], index: 0, kind: input, shape index: {}]
  %s1 = inlined_call_operand.vmem [shape: f32[32,72], index: 1, kind: input, shape index: {}]
  %s2 = inlined_call_operand.vmem [shape: f32[32,1], index: 2, kind: input, shape index: {}]
  %s3 = inlined_call_operand.vmem [shape: f32[72,256], index: 3, kind: input, shape index: {}]
  %s4 = inlined_call_operand.vmem [shape: f32[2,32,256], index: 4, kind: output, shape index: {}]
  %s5 = sld [smem:[#allocation0]]
  $region49: #{_lifting_forward_jit.1} parent=0
    _
  %s7 = ssub.s32 1, %s5
  %s8 = scalar_select 0, %s7, %s5
  loop: start=0, step=1, limit=4
  $region2: #{_lifting_forward_jit.1} parent=0 // loop_pre_header
    _
  $region3: #{_lifting_forward_jit.1} parent=0 // loop_header
    %s10 = sphi 0, %s14
    %p11 = scmp.ge.s32.totalorder %s10, 4
    %s20 = sphi 0, %s22
    %s23 = sphi 0, %s20
    %s24 = sphi 0, %s23
    %s40 = sphi 0, %s24
    %s44 = sphi 0, %s44
    %s46 = sphi 0, %s44
    %s47 = sphi 0, %s46
    %s61 = sphi 0, %s47
    %s65 = sphi 0, %s65
    %s67 = sphi 0, %s65
    %s68 = sphi 0, %s67
    %s82 = sphi 0, %s68
    %s86 = sphi 0, %s86
    %s88 = sphi 0, %s86
    %s89 = sphi 0, %s88
    %s103 = sphi 0, %s89
    %s109 = sphi 0, %s111
    %s112 = sphi 0, %s109
    %s113 = sphi 0, %s112
    %s129 = sphi 0, %s113
  $region4: #{_lifting_forward_jit.1} parent=0 // loop_header_branch
    %13 = sbr.rel (%p11) target = $region8
  $region5: #{_lifting_forward_jit.1} parent=0 // loop_body
    %s15 = ssub.s32 %s10, 1
    %s16 = ssub.s32 %s10, 2
    %s17 = sadd.s32 %s10, 1
    %s18 = ssub.s32 %s10, %s17
    %p19 = scmp.eq.s32.totalorder %s18, 0
    %s21 = sadd.s32 %s20, 1
    %s22 = scalar_select %p19, %s20, %s21
    %p25 = pneg %p19
    %p26 = scmp.eq.s32.totalorder %s10, 1
    %p27 = por %p25, %p26
    %p28 = scmp.ne.s32.totalorder %s20, %s23
    %p29 = scmp.eq.s32.totalorder %s10, 0
    %p30 = por %p28, %p29
    %p31 = scmp.ne.s32.totalorder %s20, %s23
    %p32 = scmp.eq.s32.totalorder %s15, 1
    %p33 = por %p31, %p32
    %p34 = scmp.ne.s32.totalorder %s23, %s24
    %p35 = scmp.eq.s32.totalorder %s15, 0
    %p36 = por %p34, %p35
    %p37 = scmp.ne.s32.totalorder %s23, %s24
    %p38 = scmp.eq.s32.totalorder %s16, 1
    %p39 = por %p37, %p38
    %p41 = scmp.ne.s32.totalorder %s24, %s40
    %p42 = scmp.eq.s32.totalorder %s16, 0
    %p43 = por %p41, %p42
    %s45 = sadd.s32 %s44, 1
    %p48 = scmp.eq.s32.totalorder %s10, 1
    %p49 = scmp.ne.s32.totalorder %s44, %s46
    %p50 = scmp.eq.s32.totalorder %s10, 0
    %p51 = por %p49, %p50
    %p52 = scmp.ne.s32.totalorder %s44, %s46
    %p53 = scmp.eq.s32.totalorder %s15, 1
    %p54 = por %p52, %p53
    %p55 = scmp.ne.s32.totalorder %s46, %s47
    %p56 = scmp.eq.s32.totalorder %s15, 0
    %p57 = por %p55, %p56
    %p58 = scmp.ne.s32.totalorder %s46, %s47
    %p59 = scmp.eq.s32.totalorder %s16, 1
    %p60 = por %p58, %p59
    %p62 = scmp.ne.s32.totalorder %s47, %s61
    %p63 = scmp.eq.s32.totalorder %s16, 0
    %p64 = por %p62, %p63
    %s66 = sadd.s32 %s65, 1
    %p69 = scmp.eq.s32.totalorder %s10, 1
    %p70 = scmp.ne.s32.totalorder %s65, %s67
    %p71 = scmp.eq.s32.totalorder %s10, 0
    %p72 = por %p70, %p71
    %p73 = scmp.ne.s32.totalorder %s65, %s67
    %p74 = scmp.eq.s32.totalorder %s15, 1
    %p75 = por %p73, %p74
    %p76 = scmp.ne.s32.totalorder %s67, %s68
    %p77 = scmp.eq.s32.totalorder %s15, 0
    %p78 = por %p76, %p77
    %p79 = scmp.ne.s32.totalorder %s67, %s68
    %p80 = scmp.eq.s32.totalorder %s16, 1
    %p81 = por %p79, %p80
    %p83 = scmp.ne.s32.totalorder %s68, %s82
    %p84 = scmp.eq.s32.totalorder %s16, 0
    %p85 = por %p83, %p84
    %s87 = sadd.s32 %s86, 1
    %p90 = scmp.eq.s32.totalorder %s10, 1
    %p91 = scmp.ne.s32.totalorder %s86, %s88
    %p92 = scmp.eq.s32.totalorder %s10, 0
    %p93 = por %p91, %p92
    %p94 = scmp.ne.s32.totalorder %s86, %s88
    %p95 = scmp.eq.s32.totalorder %s15, 1
    %p96 = por %p94, %p95
    %p97 = scmp.ne.s32.totalorder %s88, %s89
    %p98 = scmp.eq.s32.totalorder %s15, 0
    %p99 = por %p97, %p98
    %p100 = scmp.ne.s32.totalorder %s88, %s89
    %p101 = scmp.eq.s32.totalorder %s16, 1
    %p102 = por %p100, %p101
    %p104 = scmp.ne.s32.totalorder %s89, %s103
    %p105 = scmp.eq.s32.totalorder %s16, 0
    %p106 = por %p104, %p105
    %s107 = ssub.s32 %s10, %s17
    %p108 = scmp.eq.s32.totalorder %s107, 0
    %s110 = sadd.s32 %s109, 1
    %s111 = scalar_select %p108, %s109, %s110
    %p114 = pneg %p108
    %p115 = scmp.eq.s32.totalorder %s10, 1
    %p116 = por %p114, %p115
    %p117 = scmp.ne.s32.totalorder %s109, %s112
    %p118 = scmp.eq.s32.totalorder %s10, 0
    %p119 = por %p117, %p118
    %p120 = scmp.ne.s32.totalorder %s109, %s112
    %p121 = scmp.eq.s32.totalorder %s15, 1
    %p122 = por %p120, %p121
    %p123 = scmp.ne.s32.totalorder %s112, %s113
    %p124 = scmp.eq.s32.totalorder %s15, 0
    %p125 = por %p123, %p124
    %p126 = scmp.ne.s32.totalorder %s112, %s113
    %p127 = scmp.eq.s32.totalorder %s16, 1
    %p128 = por %p126, %p127
    %p130 = scmp.ne.s32.totalorder %s113, %s129
    %p131 = scmp.eq.s32.totalorder %s16, 0
    %p132 = por %p130, %p131
    %p133 = scmp.le.s32.totalorder 1, %s10
    %p134 = scmp.lt.s32.totalorder %s10, 3
    %p135 = pnand %p133, %p134
    %p136 = pneg %p135
    // Predicated region
    $region9: #{_lifting_forward_jit.1} parent=5 // pred_check
      _
    $region10: #{_lifting_forward_jit.1} parent=5 // pred_check_branch
      %138 = sbr.rel (%p135) target = $region12
    $region11: #{_lifting_forward_jit.1} parent=5 // pred_region
      %s139 = ssub.s32 %s10, 1
      // Predicated region
      $region13: #{_lifting_forward_jit.1} parent=11 // pred_check
        %p140 = pneg %p57
      $region14: #{_lifting_forward_jit.1} parent=11 // pred_check_branch
        %142 = sbr.rel (%p140) target = $region16
      $region15: #{_lifting_forward_jit.1} parent=11 // pred_region
        _
      $region16: #{_lifting_forward_jit.1} parent=11 // pred_fallthru
        _
      // Predicated region
      $region17: #{_lifting_forward_jit.1} parent=11 // pred_check
        %p143 = pneg %p78
      $region18: #{_lifting_forward_jit.1} parent=11 // pred_check_branch
        %145 = sbr.rel (%p143) target = $region20
      $region19: #{_lifting_forward_jit.1} parent=11 // pred_region
        _
      $region20: #{_lifting_forward_jit.1} parent=11 // pred_fallthru
        _
      // Predicated region
      $region21: #{_lifting_forward_jit.1} parent=11 // pred_check
        %p146 = pneg %p99
      $region22: #{_lifting_forward_jit.1} parent=11 // pred_check_branch
        %148 = sbr.rel (%p146) target = $region24
      $region23: #{_lifting_forward_jit.1} parent=11 // pred_region
        _
      $region24: #{_lifting_forward_jit.1} parent=11 // pred_fallthru
        _
    $region12: #{_lifting_forward_jit.1} parent=5 // pred_fallthru
      _
    %p149 = scmp.lt.s32.totalorder %s10, 2
    // Predicated region
    $region25: #{_lifting_forward_jit.1} parent=5 // pred_check
      %p150 = pneg %p149
    $region26: #{_lifting_forward_jit.1} parent=5 // pred_check_branch
      %152 = sbr.rel (%p150) target = $region28
    $region27: #{_lifting_forward_jit.1} parent=5 // pred_region
      // Predicated region
      $region29: #{_lifting_forward_jit.1} parent=27 // pred_check
        %p153 = pneg %p30
      $region30: #{_lifting_forward_jit.1} parent=27 // pred_check_branch
        %155 = sbr.rel (%p153) target = $region32
      $region31: #{_lifting_forward_jit.1} parent=27 // pred_region
        %p156 = scmp.lt.s32.totalorder %s10, 1
        %s157 = scalar_select %p156, %s10, 1
        %s158 = smul.addr %s157, 2
        %s159 = smul.addr %s158, 8
        %s160 = scalar_lea.vmem %s0, %s159
      $region32: #{_lifting_forward_jit.1} parent=27 // pred_fallthru
        _
    $region28: #{_lifting_forward_jit.1} parent=5 // pred_fallthru
      _
    %p161 = scmp.le.s32.totalorder 1, %s10
    %p162 = scmp.lt.s32.totalorder %s10, 3
    %p163 = pnand %p161, %p162
    %p164 = pneg %p163
    // Predicated region
    $region33: #{_lifting_forward_jit.1} parent=5 // pred_check
      _
    $region34: #{_lifting_forward_jit.1} parent=5 // pred_check_branch
      %166 = sbr.rel (%p163) target = $region36
    $region35: #{_lifting_forward_jit.1} parent=5 // pred_region
      %s167 = ssub.s32 %s10, 1
      %p168 = scmp.lt.s32.totalorder %s15, 1
      %s169 = scalar_select %p168, %s15, 1
      %s170 = smul.addr %s169, 2
      %s171 = smul.addr %s170, 8
      %s172 = scalar_lea.vmem %s0, %s171
      %p173 = pneg %p36
      %p174 = pneg %p33
      %p175 = pneg %p57
      %p176 = pneg %p54
      %p177 = pneg %p78
      %p178 = pneg %p75
      %p179 = pneg %p99
      %p180 = pneg %p96
      %p181 = pneg %p125
      %p182 = pneg %p122
      %p183 = scmp.lt.s32.totalorder %s15, 1
      %s184 = scalar_select %p183, %s15, 1
      %s185 = smul.addr %s184, 8
      %s186 = smul.addr %s185, 8
      %s187 = scalar_lea.vmem %s4, %s186
      %p188 = scmp.lt.s32.totalorder %s15, 1
      %s189 = scalar_select %p188, %s15, 1
      %s190 = smul.addr %s189, 2
      %s191 = smul.addr %s190, 8
      %s192 = scalar_lea.vmem %s0, %s191
      %p193 = scmp.lt.s32.totalorder %s15, 1
      %s194 = scalar_select %p193, %s15, 1
      %s195 = smul.addr %s194, 8
      %s196 = smul.addr %s195, 8
      %s197 = scalar_lea.vmem %s4, %s196
      %v198 = vld [vmem:[%s192] sm:$0xff]
      %v199 = vld [vmem:[%s192 + $0x8] sm:$0xff]
      %200 = vrot.lane.b32.xlu0 %v198, 17
      %v201 = vpop.permute.xlu0 %200
      %202 = vrot.lane.b32.xlu0 %v199, 17
      %v203 = vpop.permute.xlu0 %202
      %v204 = vlaneseq
      %v205 = vand.u32 %v204, 127
      %vm206 = vcmp.lt.s32.totalorder %v205, 17
      %v207 = vsel %vm206, %v201, %v203
      %v208 = vsel %vm206, %v203, %v201
      %v209 = vld [vmem:[%s3] sm:$0xff]
      %v210 = vld [vmem:[%s3 + $0x8] sm:$0xff]
      %v211 = vmul.f32 %v208, %v209
      %v212 = vmul.f32 %v207, %v210
      %213 = vst [vmem:[#allocation2] sm:$0xff] %v211
      %214 = vst [vmem:[#allocation2 + $0x8] sm:$0xff] %v212
      %215 = vrot.lane.b32.xlu0 %v198, 16
      %v216 = vpop.permute.xlu0 %215
      %217 = vrot.lane.b32.xlu0 %v199, 16
      %v218 = vpop.permute.xlu0 %217
      %vm219 = vcmp.lt.s32.totalorder %v205, 16
      %v220 = vsel %vm219, %v216, %v218
      %v221 = vsel %vm219, %v218, %v216
      %v222 = vld [vmem:[%s3 + $0x10] sm:$0xff]
      %v223 = vld [vmem:[%s3 + $0x18] sm:$0xff]
      %v224 = vmul.f32 %v221, %v222
      %v225 = vmul.f32 %v220, %v223
      %226 = vst [vmem:[#allocation2 + $0x10] sm:$0xff] %v224
      %227 = vst [vmem:[#allocation2 + $0x18] sm:$0xff] %v225
      %228 = vrot.lane.b32.xlu0 %v198, 15
      %v229 = vpop.permute.xlu0 %228
      %230 = vrot.lane.b32.xlu0 %v199, 15
      %v231 = vpop.permute.xlu0 %230
      %vm232 = vcmp.lt.s32.totalorder %v205, 15
      %v233 = vsel %vm232, %v229, %v231
      %v234 = vsel %vm232, %v231, %v229
      %v235 = vld [vmem:[%s3 + $0x20] sm:$0xff]
      %v236 = vld [vmem:[%s3 + $0x28] sm:$0xff]
      %v237 = vmul.f32 %v234, %v235
      %v238 = vmul.f32 %v233, %v236
      %239 = vst [vmem:[#allocation2 + $0x20] sm:$0xff] %v237
      %240 = vst [vmem:[#allocation2 + $0x28] sm:$0xff] %v238
      %241 = vrot.lane.b32.xlu0 %v198, 1
      %v242 = vpop.permute.xlu0 %241
      %243 = vrot.lane.b32.xlu0 %v199, 1
      %v244 = vpop.permute.xlu0 %243
      %vm245 = vcmp.lt.s32.totalorder %v205, 1
      %v246 = vsel %vm245, %v242, %v244
      %v247 = vsel %vm245, %v244, %v242
      %v248 = vld [vmem:[%s3 + $0x30] sm:$0xff]
      %v249 = vld [vmem:[%s3 + $0x38] sm:$0xff]
      %v250 = vmul.f32 %v247, %v248
      %v251 = vmul.f32 %v246, %v249
      %252 = vst [vmem:[#allocation2 + $0x30] sm:$0xff] %v250
      %253 = vst [vmem:[#allocation2 + $0x38] sm:$0xff] %v251
      %254 = vst [vmem:[#allocation2 + $0x40] sm:$0xff] %v198
      %255 = vst [vmem:[#allocation2 + $0x48] sm:$0xff] %v199
      %256 = vrot.lane.b32.xlu0 %v198, 127
      %v257 = vpop.permute.xlu0 %256
      %258 = vrot.lane.b32.xlu0 %v199, 127
      %v259 = vpop.permute.xlu0 %258
      %vm260 = vcmp.lt.s32.totalorder %v205, 127
      %v261 = vsel %vm260, %v257, %v259
      %v262 = vsel %vm260, %v259, %v257
      %v263 = vld [vmem:[%s3 + $0x50] sm:$0xff]
      %v264 = vld [vmem:[%s3 + $0x58] sm:$0xff]
      %v265 = vmul.f32 %v261, %v263
      %v266 = vmul.f32 %v262, %v264
      %267 = vst [vmem:[#allocation2 + $0x50] sm:$0xff] %v265
      %268 = vst [vmem:[#allocation2 + $0x58] sm:$0xff] %v266
      %269 = vrot.lane.b32.xlu0 %v198, 113
      %v270 = vpop.permute.xlu0 %269
      %271 = vrot.lane.b32.xlu0 %v199, 113
      %v272 = vpop.permute.xlu0 %271
      %vm273 = vcmp.lt.s32.totalorder %v205, 113
      %v274 = vsel %vm273, %v270, %v272
      %v275 = vsel %vm273, %v272, %v270
      %v276 = vld [vmem:[%s3 + $0x60] sm:$0xff]
      %v277 = vld [vmem:[%s3 + $0x68] sm:$0xff]
      %v278 = vmul.f32 %v274, %v276
      %v279 = vmul.f32 %v275, %v277
      %280 = vst [vmem:[#allocation2 + $0x60] sm:$0xff] %v278
      %281 = vst [vmem:[#allocation2 + $0x68] sm:$0xff] %v279
      %282 = vrot.lane.b32.xlu0 %v198, 112
      %v283 = vpop.permute.xlu0 %282
      %284 = vrot.lane.b32.xlu0 %v199, 112
      %v285 = vpop.permute.xlu0 %284
      %vm286 = vcmp.lt.s32.totalorder %v205, 112
      %v287 = vsel %vm286, %v283, %v285
      %v288 = vsel %vm286, %v285, %v283
      %v289 = vld [vmem:[%s3 + $0x70] sm:$0xff]
      %v290 = vld [vmem:[%s3 + $0x78] sm:$0xff]
      %v291 = vmul.f32 %v287, %v289
      %v292 = vmul.f32 %v288, %v290
      %293 = vst [vmem:[#allocation2 + $0x70] sm:$0xff] %v291
      %294 = vst [vmem:[#allocation2 + $0x78] sm:$0xff] %v292
      %295 = vrot.lane.b32.xlu0 %v198, 111
      %v296 = vpop.permute.xlu0 %295
      %297 = vrot.lane.b32.xlu0 %v199, 111
      %v298 = vpop.permute.xlu0 %297
      %vm299 = vcmp.lt.s32.totalorder %v205, 111
      %v300 = vsel %vm299, %v296, %v298
      %v301 = vsel %vm299, %v298, %v296
      %v302 = vld [vmem:[%s3 + $0x80] sm:$0xff]
      %v303 = vld [vmem:[%s3 + $0x88] sm:$0xff]
      %v304 = vmul.f32 %v300, %v302
      %v305 = vmul.f32 %v301, %v303
      %306 = vst [vmem:[#allocation2 + $0x80] sm:$0xff] %v304
      %307 = vst [vmem:[#allocation2 + $0x88] sm:$0xff] %v305
      %v308 = vld [vmem:[%s1] sm:$0xff]
      %v309 = vld [vmem:[%s1 + $0x8] sm:$0xff]
      %v310 = vld [vmem:[%s1 + $0x10] sm:$0xff]
      %v311 = vld [vmem:[%s1 + $0x18] sm:$0xff]
      %v312 = vld [vmem:[#allocation2] sm:$0xff]
      %v313 = vld [vmem:[#allocation2 + $0x8] sm:$0xff]
      %v314 = vld [vmem:[#allocation2 + $0x10] sm:$0xff]
      %v315 = vld [vmem:[#allocation2 + $0x18] sm:$0xff]
      %v316 = vld [vmem:[#allocation2 + $0x20] sm:$0xff]
      %v317 = vld [vmem:[#allocation2 + $0x28] sm:$0xff]
      %v318 = vld [vmem:[#allocation2 + $0x30] sm:$0xff]
      %v319 = vld [vmem:[#allocation2 + $0x38] sm:$0xff]
      %v320 = vld [vmem:[#allocation2 + $0x40] sm:$0xff]
      %v321 = vld [vmem:[#allocation2 + $0x48] sm:$0xff]
      %v322 = vld [vmem:[#allocation2 + $0x50] sm:$0xff]
      %v323 = vld [vmem:[#allocation2 + $0x58] sm:$0xff]
      %v324 = vld [vmem:[#allocation2 + $0x60] sm:$0xff]
      %v325 = vld [vmem:[#allocation2 + $0x68] sm:$0xff]
      %v326 = vld [vmem:[#allocation2 + $0x70] sm:$0xff]
      %v327 = vld [vmem:[#allocation2 + $0x78] sm:$0xff]
      %v328 = vld [vmem:[#allocation2 + $0x80] sm:$0xff]
      %v329 = vld [vmem:[#allocation2 + $0x88] sm:$0xff]
      %v330 = vld [vmem:[%s2] sm:$0xff]
      %v331 = vld [vmem:[%s2 + $0x8] sm:$0xff]
      %v332 = vld [vmem:[%s2 + $0x10] sm:$0xff]
      %v333 = vld [vmem:[%s2 + $0x18] sm:$0xff]
      %335 = vset.pattern.permute.xlu0 0
      %336 = vperm.xlu0 %335, %v330
      %v337 = vpop.permute.xlu0 %336
      %340 = vset.pattern.permute.xlu0 0
      %341 = vperm.xlu0 %340, %v331
      %v342 = vpop.permute.xlu0 %341
      %345 = vset.pattern.permute.xlu0 0
      %346 = vperm.xlu0 %345, %v332
      %v347 = vpop.permute.xlu0 %346
      %350 = vset.pattern.permute.xlu0 0
      %351 = vperm.xlu0 %350, %v333
      %v352 = vpop.permute.xlu0 %351
      %vm354 = vcmask 588800
      %v356 = vsel %vm354, %v308, 0
      %v359 = vsel %vm354, %v309, 0
      %v362 = vsel %vm354, %v310, 0
      %v365 = vsel %vm354, %v311, 0
      %367 = vmatprep.subr.mxu0 %v313
      %368 = vmatpush1.msra.mxu0 %v312
      %369 = vmatprep.subr.mxu0 %v315
      %370 = vmatpush1.msra.mxu0 %v314
      %371 = vmatprep.subr.mxu0 %v317
      %372 = vmatpush1.msra.mxu0 %v316
      %373 = vmatprep.subr.mxu0 %v319
      %374 = vmatpush1.msra.mxu0 %v318
      %375 = vmatprep.subr.mxu0 %v321
      %376 = vmatpush1.msra.mxu0 %v320
      %377 = vmatprep.subr.mxu0 %v323
      %378 = vmatpush1.msra.mxu0 %v322
      %379 = vmatprep.subr.mxu0 %v325
      %380 = vmatpush1.msra.mxu0 %v324
      %381 = vmatprep.subr.mxu0 %v327
      %382 = vmatpush1.msra.mxu0 %v326
      %383 = vmatprep.subr.mxu0 %v329
      %384 = vmatpush1.msra.mxu0 %v328
      %385 = vmatprep.subr.mxu0 0.0
      %386 = vmatpush1.msra.mxu0 0.0
      %387 = vmatprep.subr.mxu0 0.0
      %388 = vmatpush1.msra.mxu0 0.0
      %389 = vmatprep.subr.mxu0 0.0
      %390 = vmatpush1.msra.mxu0 0.0
      %391 = vmatprep.subr.mxu0 0.0
      %392 = vmatpush1.msra.mxu0 0.0
      %393 = vmatprep.subr.mxu0 0.0
      %394 = vmatpush1.msra.mxu0 0.0
      %395 = vmatprep.subr.mxu0 0.0
      %396 = vmatpush1.msra.mxu0 0.0
      %397 = vmatprep.subr.mxu0 0.0
      %398 = vmatpush1.msra.mxu0 0.0
      %399 = vmatprep.subr.mxu0 0.0
      %400 = vmatpush1.msra.mxu0 0.0
      %401 = vmatprep.subr.mxu0 0.0
      %402 = vmatpush1.msra.mxu0 0.0
      %403 = vmatprep.subr.mxu0 0.0
      %404 = vmatpush1.msra.mxu0 0.0
      %405 = vmatprep.subr.mxu0 0.0
      %406 = vmatpush1.msra.mxu0 0.0
      %407 = vmatprep.subr.mxu0 0.0
      %408 = vmatpush1.msra.mxu0 0.0
      %409 = vmatprep.subr.mxu0 0.0
      %410 = vmatpush1.msra.mxu0 0.0
      %411 = vmatprep.subr.mxu0 0.0
      %412 = vmatpush1.msra.mxu0 0.0
      %413 = vmatprep.subr.mxu0 0.0
      %414 = vmatpush1.msra.mxu0 0.0
      %415 = vmatprep.subr.mxu0 0.0
      %416 = vmatpush1.msra.mxu0 0.0
      %417 = vmatprep.subr.mxu0 0.0
      %418 = vmatpush1.msra.mxu0 0.0
      %419 = vmatprep.subr.mxu0 0.0
      %420 = vmatpush1.msra.mxu0 0.0
      %421 = vmatprep.subr.mxu0 0.0
      %422 = vmatpush1.msra.mxu0 0.0
      %423 = vmatprep.subr.mxu0 0.0
      %424 = vmatpush1.msra.mxu0 0.0
      %425 = vmatprep.subr.mxu0 0.0
      %426 = vmatpush1.msra.mxu0 0.0
      %427 = vmatprep.subr.mxu0 0.0
      %428 = vmatpush1.msra.mxu0 0.0
      %429 = vmatprep.subr.mxu0 0.0
      %430 = vmatpush1.msra.mxu0 0.0
      %431 = vmatprep.mubr.f32.mxu0 0.0
      %432 = vmatmul.mubr.f32.gmra.mrb[0].mxu0 %v356
      %v433 = vpop.f32.mrb[0].mxu0
      %v434 = vadd.f32 %v337, %v433
      %v435 = vpop.f32.mrb[0].mxu0
      %v436 = vadd.f32 %v337, %v435
      %437 = vmatprep.mubr.f32.mxu0 0.0
      %438 = vmatmul.mubr.f32.gmra.mrb[0].mxu0 %v359
      %v439 = vpop.f32.mrb[0].mxu0
      %v440 = vadd.f32 %v342, %v439
      %v441 = vpop.f32.mrb[0].mxu0
      %v442 = vadd.f32 %v342, %v441
      %443 = vmatprep.mubr.f32.mxu0 0.0
      %444 = vmatmul.mubr.f32.gmra.mrb[0].mxu0 %v362
      %v445 = vpop.f32.mrb[0].mxu0
      %v446 = vadd.f32 %v347, %v445
      %v447 = vpop.f32.mrb[0].mxu0
      %v448 = vadd.f32 %v347, %v447
      %449 = vmatprep.mubr.f32.mxu0 0.0
      %450 = vmatmul.mubr.f32.gmra.mrb[0].mxu0 %v365
      %v451 = vpop.f32.mrb[0].mxu0
      %v452 = vadd.f32 %v352, %v451
      %v453 = vpop.f32.mrb[0].mxu0
      %v454 = vadd.f32 %v352, %v453
      %455 = vdwg.mxu0
      %456 = vst [vmem:[%s197] sm:$0xff] %v434
      %457 = vst [vmem:[%s197 + $0x8] sm:$0xff] %v436
      %458 = vst [vmem:[%s197 + $0x10] sm:$0xff] %v440
      %459 = vst [vmem:[%s197 + $0x18] sm:$0xff] %v442
      %460 = vst [vmem:[%s197 + $0x20] sm:$0xff] %v446
      %461 = vst [vmem:[%s197 + $0x28] sm:$0xff] %v448
      %462 = vst [vmem:[%s197 + $0x30] sm:$0xff] %v452
      %463 = vst [vmem:[%s197 + $0x38] sm:$0xff] %v454
      %p464 = scmp.lt.s32.totalorder %s15, 1
      %s465 = scalar_select %p464, %s15, 1
      %s466 = smul.addr %s465, 8
      %s467 = smul.addr %s466, 8
      %s468 = scalar_lea.vmem %s4, %s467
      // Predicated region
      $region37: #{_lifting_forward_jit.1} parent=35 // pred_check
        %p469 = pneg %p122
      $region38: #{_lifting_forward_jit.1} parent=35 // pred_check_branch
        %471 = sbr.rel (%p469) target = $region40
      $region39: #{_lifting_forward_jit.1} parent=35 // pred_region
        _
      $region40: #{_lifting_forward_jit.1} parent=35 // pred_fallthru
        _
    $region36: #{_lifting_forward_jit.1} parent=5 // pred_fallthru
      _
    %p472 = scmp.le.s32.totalorder 2, %s10
    // Predicated region
    $region41: #{_lifting_forward_jit.1} parent=5 // pred_check
      %p473 = pneg %p472
    $region42: #{_lifting_forward_jit.1} parent=5 // pred_check_branch
      %475 = sbr.rel (%p473) target = $region44
    $region43: #{_lifting_forward_jit.1} parent=5 // pred_region
      %s476 = ssub.s32 %s10, 2
      // Predicated region
      $region45: #{_lifting_forward_jit.1} parent=43 // pred_check
        %p477 = pneg %p128
      $region46: #{_lifting_forward_jit.1} parent=43 // pred_check_branch
        %479 = sbr.rel (%p477) target = $region48
      $region47: #{_lifting_forward_jit.1} parent=43 // pred_region
        %p480 = scmp.lt.s32.totalorder %s16, 1
        %s481 = scalar_select %p480, %s16, 1
        %s482 = smul.addr %s481, 8
        %s483 = smul.addr %s482, 8
        %s484 = scalar_lea.vmem %s4, %s483
      $region48: #{_lifting_forward_jit.1} parent=43 // pred_fallthru
        _
    $region44: #{_lifting_forward_jit.1} parent=5 // pred_fallthru
      _
  $region6: #{_lifting_forward_jit.1} parent=0 // loop_footer
    %s14 = sadd.s32 1, %s10
  $region7: #{_lifting_forward_jit.1} parent=0 // loop_footer_branch
    %9 = sbr.rel target = $region3
  $region8: #{_lifting_forward_jit.1} parent=0 // loop_exit
    _

</llo_original>
